<compile_context>
chip_gen: v5e
topology: v5e:2x2
jax: 0.10.0
libtpu: 0.0.40
codegen_flags: <defaults>
</compile_context>

<pallas_src>
from functools import partial

import jax
import jax.numpy as jnp
from jax import lax
from jax.experimental import pallas as pl
from jax.experimental.pallas import tpu as pltpu

_LEAKY_SLOPE = 0.01  # nn.LeakyReLU() default


# ----------------------------------------------------------------------------
# Fused Pallas kernel: whole batch folded into lanes, single grid step.
# ----------------------------------------------------------------------------
def _residual_block_kernel(x_ref, w1_ref, b1_ref, w2_ref, b2_ref, mask_ref,
                           o_ref, *, W, L):
    # x_ref   : (C, L)    input, L = N*H*W folded into lanes
    # w*_ref  : (C, 9C)   weights, column index = tap*C + cin, tap = ky*3 + kx
    # b*_ref  : (C, 1)    bias
    # mask_ref: (9C, L)   f32 halo masks for the stacked im2col operand
    # o_ref   : (C, L)    output
    x = x_ref[...]
    mask = mask_ref[...]

    offsets = [dy * W + dx for dy in (-1, 0, 1) for dx in (-1, 0, 1)]

    def conv3x3(v, w, b):
        # Build the (9C, L) tap-stacked operand with XLU lane rolls, zero the
        # out-of-image halo in one multiply, then a single MXU matmul.
        cols = [v if off == 0 else pltpu.roll(v, shift=(-off) % L, axis=1)
                for off in offsets]
        stacked = jnp.concatenate(cols, axis=0) * mask          # (9C, L)
        return jnp.dot(w, stacked,
                       preferred_element_type=jnp.float32) + b  # (C, L)

    y = conv3x3(x, w1_ref[...], b1_ref[...])
    y = jnp.where(y >= 0, y, _LEAKY_SLOPE * y)                  # LeakyReLU
    y = conv3x3(y, w2_ref[...], b2_ref[...])
    o_ref[...] = (x + y).astype(o_ref.dtype)                    # residual add


# ----------------------------------------------------------------------------
# Wrapper: NCHW in / NCHW out (matches the PyTorch module).
# ----------------------------------------------------------------------------
def residual_block_forward(params, x_nchw):
    N, C, H, W = x_nchw.shape
    HW = H * W
    L = N * HW

    # Fold batch into lanes: (N,C,H,W) -> (C, N*H*W).  Layout plumbing only;
    # cheap at these shapes and makes the kernel a single lane-dense step.
    x_cl = jnp.transpose(x_nchw, (1, 0, 2, 3)).reshape(C, L)

    def to_mat(w_oihw):  # (Co,Ci,3,3) -> (Co, 9*Ci), col = (ky*3+kx)*Ci + ci
        return jnp.transpose(w_oihw, (0, 2, 3, 1)).reshape(C, 9 * C)

    w1 = to_mat(params["w1"])
    w2 = to_mat(params["w2"])
    b1 = params["b1"].reshape(C, 1)
    b2 = params["b2"].reshape(C, 1)

    # Precompute the 9 halo masks once, tiled over the batch and expanded to
    # the stacked (9C, L) operand shape.  Passed as a VMEM-resident input.
    hh = jnp.arange(HW, dtype=jnp.int32) // W
    ww = jnp.arange(HW, dtype=jnp.int32) % W
    rows = []
    for dy in (-1, 0, 1):
        for dx in (-1, 0, 1):
            rows.append((hh + dy >= 0) & (hh + dy < H)
                        & (ww + dx >= 0) & (ww + dx < W))
    mask = jnp.stack(rows).astype(jnp.float32)                  # (9, HW)
    mask = jnp.tile(mask, (1, N))                               # (9, L)
    mask = jnp.repeat(mask, C, axis=0)                          # (9C, L)

    kernel = partial(_residual_block_kernel, W=W, L=L)
    out_cl = pl.pallas_call(
        kernel,
        out_shape=jax.ShapeDtypeStruct((C, L), jnp.float32),
        grid=(1,),
        in_specs=[
            pl.BlockSpec((C, L), lambda i: (0, 0)),         # x
            pl.BlockSpec((C, 9 * C), lambda i: (0, 0)),     # w1
            pl.BlockSpec((C, 1), lambda i: (0, 0)),         # b1
            pl.BlockSpec((C, 9 * C), lambda i: (0, 0)),     # w2
            pl.BlockSpec((C, 1), lambda i: (0, 0)),         # b2
            pl.BlockSpec((9 * C, L), lambda i: (0, 0)),     # masks
        ],
        out_specs=pl.BlockSpec((C, L), lambda i: (0, 0)),
        compiler_params=pltpu.CompilerParams(
            dimension_semantics=("arbitrary",)),
    )(x_cl, w1, b1, w2, b2, mask)

    return jnp.transpose(out_cl.reshape(C, N, H, W), (1, 0, 2, 3))


# ----------------------------------------------------------------------------
# Parameter init (PyTorch OIHW layout) + pure-JAX reference (correctness only)
# ----------------------------------------------------------------------------
def init_params(key, in_features):
    k1, k2, k3, k4 = jax.random.split(key, 4)
    w1 = 0.1 * jax.random.normal(k1, (in_features, in_features, 3, 3), jnp.float32)
    b1 = 0.1 * jax.random.normal(k2, (in_features,), jnp.float32)
    w2 = 0.1 * jax.random.normal(k3, (in_features, in_features, 3, 3), jnp.float32)
    b2 = 0.1 * jax.random.normal(k4, (in_features,), jnp.float32)
    return {"w1": w1, "b1": b1, "w2": w2, "b2": b2}


def _ref_forward(params, x):
    C = x.shape[1]

    def conv(v, w, b):
        y = lax.conv_general_dilated(
            v, w, window_strides=(1, 1), padding=((1, 1), (1, 1)),
            dimension_numbers=("NCHW", "OIHW", "NCHW"))
        return y + b.reshape(1, C, 1, 1)

    y = conv(x, params["w1"], params["b1"])
    y = jnp.where(y >= 0, y, _LEAKY_SLOPE * y)
    y = conv(y, params["w2"], params["b2"])
    return x + y


if __name__ == "__main__":
    key = jax.random.PRNGKey(0)
    k_param, k_x = jax.random.split(key)

    N, C, H, W = 2, 4, 16, 16
    params = init_params(k_param, C)
    x = jax.random.normal(k_x, (N, C, H, W), jnp.float32)   # NCHW

    fwd = jax.jit(residual_block_forward)
    out = jax.block_until_ready(fwd(params, x))

    ref = jax.block_until_ready(_ref_forward(params, x))
    assert out.shape == (N, C, H, W)
    assert jnp.allclose(out, ref, atol=1e-4, rtol=1e-4)

    print("KERNEL_OK")
</pallas_src>

<mosaic_0001>
module attributes {stable_mosaic.version = 11 : i64} {
  func.func @_residual_block_kernel(%arg0: i32, %arg1: memref<4x512xf32, #tpu.memory_space<vmem>>, %arg2: memref<4x36xf32, #tpu.memory_space<vmem>>, %arg3: memref<4x1xf32, #tpu.memory_space<vmem>>, %arg4: memref<4x36xf32, #tpu.memory_space<vmem>>, %arg5: memref<4x1xf32, #tpu.memory_space<vmem>>, %arg6: memref<36x512xf32, #tpu.memory_space<vmem>>, %arg7: memref<4x512xf32, #tpu.memory_space<vmem>>) attributes {dimension_semantics = [#tpu.dimension_semantics<arbitrary>], iteration_bounds = array<i64: 1>, scalar_prefetch = 0 : i64, scratch_operands = 0 : i64, tpu.core_type = #tpu.core_type<tc>, window_params = [{pipeline_mode = #tpu.pipeline_mode<synchronous>, transform_indices = @transform_0, window_bounds = array<i64: 4, 512>}, {pipeline_mode = #tpu.pipeline_mode<synchronous>, transform_indices = @transform_1, window_bounds = array<i64: 4, 36>}, {pipeline_mode = #tpu.pipeline_mode<synchronous>, transform_indices = @transform_2, window_bounds = array<i64: 4, 1>}, {pipeline_mode = #tpu.pipeline_mode<synchronous>, transform_indices = @transform_3, window_bounds = array<i64: 4, 36>}, {pipeline_mode = #tpu.pipeline_mode<synchronous>, transform_indices = @transform_4, window_bounds = array<i64: 4, 1>}, {pipeline_mode = #tpu.pipeline_mode<synchronous>, transform_indices = @transform_5, window_bounds = array<i64: 36, 512>}, {pipeline_mode = #tpu.pipeline_mode<synchronous>, transform_indices = @transform_6, window_bounds = array<i64: 4, 512>}]} {
    %c0 = arith.constant 0 : index
    %c0_0 = arith.constant 0 : index
    %0 = vector.load %arg1[%c0, %c0_0] : memref<4x512xf32, #tpu.memory_space<vmem>>, vector<4x512xf32>
    %c0_1 = arith.constant 0 : index
    %c0_2 = arith.constant 0 : index
    %1 = vector.load %arg6[%c0_1, %c0_2] : memref<36x512xf32, #tpu.memory_space<vmem>>, vector<36x512xf32>
    %c0_3 = arith.constant 0 : index
    %c0_4 = arith.constant 0 : index
    %2 = vector.load %arg2[%c0_3, %c0_4] : memref<4x36xf32, #tpu.memory_space<vmem>>, vector<4x36xf32>
    %c0_5 = arith.constant 0 : index
    %c0_6 = arith.constant 0 : index
    %3 = vector.load %arg3[%c0_5, %c0_6] : memref<4x1xf32, #tpu.memory_space<vmem>>, vector<4x1xf32>
    %c17_i32 = arith.constant 17 : i32
    %4 = tpu.dynamic_rotate %0 by %c17_i32 dim 1 : vector<4x512xf32>, i32 -> vector<4x512xf32>
    %c16_i32 = arith.constant 16 : i32
    %5 = tpu.dynamic_rotate %0 by %c16_i32 dim 1 : vector<4x512xf32>, i32 -> vector<4x512xf32>
    %c15_i32 = arith.constant 15 : i32
    %6 = tpu.dynamic_rotate %0 by %c15_i32 dim 1 : vector<4x512xf32>, i32 -> vector<4x512xf32>
    %c1_i32 = arith.constant 1 : i32
    %7 = tpu.dynamic_rotate %0 by %c1_i32 dim 1 : vector<4x512xf32>, i32 -> vector<4x512xf32>
    %c511_i32 = arith.constant 511 : i32
    %8 = tpu.dynamic_rotate %0 by %c511_i32 dim 1 : vector<4x512xf32>, i32 -> vector<4x512xf32>
    %c497_i32 = arith.constant 497 : i32
    %9 = tpu.dynamic_rotate %0 by %c497_i32 dim 1 : vector<4x512xf32>, i32 -> vector<4x512xf32>
    %c496_i32 = arith.constant 496 : i32
    %10 = tpu.dynamic_rotate %0 by %c496_i32 dim 1 : vector<4x512xf32>, i32 -> vector<4x512xf32>
    %c495_i32 = arith.constant 495 : i32
    %11 = tpu.dynamic_rotate %0 by %c495_i32 dim 1 : vector<4x512xf32>, i32 -> vector<4x512xf32>
    %12 = tpu.concatenate %4, %5, %6, %7, %0, %8, %9, %10, %11 in 0 : vector<4x512xf32>, vector<4x512xf32>, vector<4x512xf32>, vector<4x512xf32>, vector<4x512xf32>, vector<4x512xf32>, vector<4x512xf32>, vector<4x512xf32>, vector<4x512xf32> -> vector<36x512xf32>
    %13 = arith.mulf %12, %1 : vector<36x512xf32>
    %cst = arith.constant dense<0.000000e+00> : vector<4x512xf32>
    %14 = tpu.matmul %2, %13, %cst {dimension_numbers = #tpu.dot_dimension_numbers<[1], [0], [0], [1], [0, 0, 1, 1], [], []>} : vector<4x36xf32>, vector<36x512xf32>, vector<4x512xf32> -> vector<4x512xf32>
    %15 = vector.broadcast %3 : vector<4x1xf32> to vector<4x512xf32>
    %16 = arith.addf %14, %15 : vector<4x512xf32>
    %cst_7 = arith.constant 0.000000e+00 : f32
    %17 = vector.broadcast %cst_7 : f32 to vector<4x512xf32>
    %18 = arith.cmpf oge, %16, %17 : vector<4x512xf32>
    %cst_8 = arith.constant 0.00999999977 : f32
    %19 = vector.broadcast %cst_8 : f32 to vector<4x512xf32>
    %20 = arith.mulf %19, %16 : vector<4x512xf32>
    %21 = arith.select %18, %16, %20 : vector<4x512xi1>, vector<4x512xf32>
    %c0_9 = arith.constant 0 : index
    %c0_10 = arith.constant 0 : index
    %22 = vector.load %arg4[%c0_9, %c0_10] : memref<4x36xf32, #tpu.memory_space<vmem>>, vector<4x36xf32>
    %c0_11 = arith.constant 0 : index
    %c0_12 = arith.constant 0 : index
    %23 = vector.load %arg5[%c0_11, %c0_12] : memref<4x1xf32, #tpu.memory_space<vmem>>, vector<4x1xf32>
    %c17_i32_13 = arith.constant 17 : i32
    %24 = tpu.dynamic_rotate %21 by %c17_i32_13 dim 1 : vector<4x512xf32>, i32 -> vector<4x512xf32>
    %c16_i32_14 = arith.constant 16 : i32
    %25 = tpu.dynamic_rotate %21 by %c16_i32_14 dim 1 : vector<4x512xf32>, i32 -> vector<4x512xf32>
    %c15_i32_15 = arith.constant 15 : i32
    %26 = tpu.dynamic_rotate %21 by %c15_i32_15 dim 1 : vector<4x512xf32>, i32 -> vector<4x512xf32>
    %c1_i32_16 = arith.constant 1 : i32
    %27 = tpu.dynamic_rotate %21 by %c1_i32_16 dim 1 : vector<4x512xf32>, i32 -> vector<4x512xf32>
    %c511_i32_17 = arith.constant 511 : i32
    %28 = tpu.dynamic_rotate %21 by %c511_i32_17 dim 1 : vector<4x512xf32>, i32 -> vector<4x512xf32>
    %c497_i32_18 = arith.constant 497 : i32
    %29 = tpu.dynamic_rotate %21 by %c497_i32_18 dim 1 : vector<4x512xf32>, i32 -> vector<4x512xf32>
    %c496_i32_19 = arith.constant 496 : i32
    %30 = tpu.dynamic_rotate %21 by %c496_i32_19 dim 1 : vector<4x512xf32>, i32 -> vector<4x512xf32>
    %c495_i32_20 = arith.constant 495 : i32
    %31 = tpu.dynamic_rotate %21 by %c495_i32_20 dim 1 : vector<4x512xf32>, i32 -> vector<4x512xf32>
    %32 = tpu.concatenate %24, %25, %26, %27, %21, %28, %29, %30, %31 in 0 : vector<4x512xf32>, vector<4x512xf32>, vector<4x512xf32>, vector<4x512xf32>, vector<4x512xf32>, vector<4x512xf32>, vector<4x512xf32>, vector<4x512xf32>, vector<4x512xf32> -> vector<36x512xf32>
    %33 = arith.mulf %32, %1 : vector<36x512xf32>
    %cst_21 = arith.constant dense<0.000000e+00> : vector<4x512xf32>
    %34 = tpu.matmul %22, %33, %cst_21 {dimension_numbers = #tpu.dot_dimension_numbers<[1], [0], [0], [1], [0, 0, 1, 1], [], []>} : vector<4x36xf32>, vector<36x512xf32>, vector<4x512xf32> -> vector<4x512xf32>
    %35 = vector.broadcast %23 : vector<4x1xf32> to vector<4x512xf32>
    %36 = arith.addf %34, %35 : vector<4x512xf32>
    %37 = arith.addf %0, %36 : vector<4x512xf32>
    %c0_22 = arith.constant 0 : index
    %c0_23 = arith.constant 0 : index
    %38 = vector.load %arg7[%c0_22, %c0_23] : memref<4x512xf32, #tpu.memory_space<vmem>>, vector<4x512xf32>
    tpu.vector_store %arg7[%c0_22, %c0_23], %37 {strides = array<i32>} : memref<4x512xf32, #tpu.memory_space<vmem>>, vector<4x512xf32>,
    return
  }
  func.func @transform_0(%arg0: i32) -> (i32, i32) {
    %c0_i32 = arith.constant 0 : i32
    %c0_i32_0 = arith.constant 0 : i32
    %c0_i32_1 = arith.constant 0 : i32
    return %c0_i32, %c0_i32_0 : i32, i32
  }
  func.func @transform_1(%arg0: i32) -> (i32, i32) {
    %c0_i32 = arith.constant 0 : i32
    %c0_i32_0 = arith.constant 0 : i32
    %c0_i32_1 = arith.constant 0 : i32
    return %c0_i32, %c0_i32_0 : i32, i32
  }
  func.func @transform_2(%arg0: i32) -> (i32, i32) {
    %c0_i32 = arith.constant 0 : i32
    %c0_i32_0 = arith.constant 0 : i32
    %c0_i32_1 = arith.constant 0 : i32
    return %c0_i32, %c0_i32_0 : i32, i32
  }
  func.func @transform_3(%arg0: i32) -> (i32, i32) {
    %c0_i32 = arith.constant 0 : i32
    %c0_i32_0 = arith.constant 0 : i32
    %c0_i32_1 = arith.constant 0 : i32
    return %c0_i32, %c0_i32_0 : i32, i32
  }
  func.func @transform_4(%arg0: i32) -> (i32, i32) {
    %c0_i32 = arith.constant 0 : i32
    %c0_i32_0 = arith.constant 0 : i32
    %c0_i32_1 = arith.constant 0 : i32
    return %c0_i32, %c0_i32_0 : i32, i32
  }
  func.func @transform_5(%arg0: i32) -> (i32, i32) {
    %c0_i32 = arith.constant 0 : i32
    %c0_i32_0 = arith.constant 0 : i32
    %c0_i32_1 = arith.constant 0 : i32
    return %c0_i32, %c0_i32_0 : i32, i32
  }
  func.func @transform_6(%arg0: i32) -> (i32, i32) {
    %c0_i32 = arith.constant 0 : i32
    %c0_i32_0 = arith.constant 0 : i32
    %c0_i32_1 = arith.constant 0 : i32
    return %c0_i32, %c0_i32_0 : i32, i32
  }
}

</mosaic_0001>

<llo_original>
// kernel: residual_block_forward.1
$region0: #{residual_block_forward.1}
  #allocation0 [shape = 'u32[]', space=smem, size = 0x4, offset = 0x4, fixed_abs, tag = 'smem constant byte address 0x4 - core index']
  #allocation1 [shape = 'u32[72,128]{1,0:T(1,128)}', space=vmem, size = 0x9000, scoped, tag = 'internal scratch']
  %s0 = inlined_call_operand.vmem [shape: f32[4,512], index: 0, kind: input, shape index: {}]
  %s1 = inlined_call_operand.vmem [shape: f32[4,36], index: 1, kind: input, shape index: {}]
  %s2 = inlined_call_operand.vmem [shape: f32[4,1], index: 2, kind: input, shape index: {}]
  %s3 = inlined_call_operand.vmem [shape: f32[4,36], index: 3, kind: input, shape index: {}]
  %s4 = inlined_call_operand.vmem [shape: f32[4,1], index: 4, kind: input, shape index: {}]
  %s5 = inlined_call_operand.vmem [shape: f32[36,512], index: 5, kind: input, shape index: {}]
  %s6 = inlined_call_operand.vmem [shape: f32[4,512], index: 6, kind: output, shape index: {}]
  %s7 = sld [smem:[#allocation0]]
  $region34: #{residual_block_forward.1} parent=0
    _
  %s9 = ssub.s32 1, %s7
  %s10 = scalar_select 0, %s9, %s7
  // Predicated region
  $region2: #{residual_block_forward.1} parent=0 // pred_check
    _
  $region3: #{residual_block_forward.1} parent=0 // pred_check_branch
    %12 = sbr.rel (0) target = $region5
  $region4: #{residual_block_forward.1} parent=0 // pred_region
    _
  $region5: #{residual_block_forward.1} parent=0 // pred_fallthru
    _
  // Predicated region
  $region6: #{residual_block_forward.1} parent=0 // pred_check
    _
  $region7: #{residual_block_forward.1} parent=0 // pred_check_branch
    %14 = sbr.rel (0) target = $region9
  $region8: #{residual_block_forward.1} parent=0 // pred_region
    _
  $region9: #{residual_block_forward.1} parent=0 // pred_fallthru
    _
  // Predicated region
  $region10: #{residual_block_forward.1} parent=0 // pred_check
    _
  $region11: #{residual_block_forward.1} parent=0 // pred_check_branch
    %16 = sbr.rel (0) target = $region13
  $region12: #{residual_block_forward.1} parent=0 // pred_region
    _
  $region13: #{residual_block_forward.1} parent=0 // pred_fallthru
    _
  // Predicated region
  $region14: #{residual_block_forward.1} parent=0 // pred_check
    _
  $region15: #{residual_block_forward.1} parent=0 // pred_check_branch
    %18 = sbr.rel (0) target = $region17
  $region16: #{residual_block_forward.1} parent=0 // pred_region
    _
  $region17: #{residual_block_forward.1} parent=0 // pred_fallthru
    _
  // Predicated region
  $region18: #{residual_block_forward.1} parent=0 // pred_check
    _
  $region19: #{residual_block_forward.1} parent=0 // pred_check_branch
    %20 = sbr.rel (0) target = $region21
  $region20: #{residual_block_forward.1} parent=0 // pred_region
    _
  $region21: #{residual_block_forward.1} parent=0 // pred_fallthru
    _
  // Predicated region
  $region22: #{residual_block_forward.1} parent=0 // pred_check
    _
  $region23: #{residual_block_forward.1} parent=0 // pred_check_branch
    %22 = sbr.rel (0) target = $region25
  $region24: #{residual_block_forward.1} parent=0 // pred_region
    _
  $region25: #{residual_block_forward.1} parent=0 // pred_fallthru
    _
  %v23 = vld [vmem:[%s0] sm:$0xff]
  %v24 = vld [vmem:[%s0 + $0x8] sm:$0xff]
  %v25 = vld [vmem:[%s5] sm:$0xff]
  %v26 = vld [vmem:[%s5 + $0x8] sm:$0xff]
  %v27 = vld [vmem:[%s5 + $0x10] sm:$0xff]
  %v28 = vld [vmem:[%s5 + $0x18] sm:$0xff]
  %v29 = vld [vmem:[%s5 + $0x20] sm:$0xff]
  %v30 = vld [vmem:[%s5 + $0x28] sm:$0xff]
  %v31 = vld [vmem:[%s5 + $0x30] sm:$0xff]
  %v32 = vld [vmem:[%s5 + $0x38] sm:$0xff]
  %v33 = vld [vmem:[%s5 + $0x40] sm:$0xff]
  %v34 = vld [vmem:[%s5 + $0x48] sm:$0xff]
  %v35 = vld [vmem:[%s5 + $0x50] sm:$0xff]
  %v36 = vld [vmem:[%s5 + $0x58] sm:$0xff]
  %v37 = vld [vmem:[%s5 + $0x60] sm:$0xff]
  %v38 = vld [vmem:[%s5 + $0x68] sm:$0xff]
  %v39 = vld [vmem:[%s5 + $0x70] sm:$0xff]
  %v40 = vld [vmem:[%s5 + $0x78] sm:$0xff]
  %v41 = vld [vmem:[%s5 + $0x80] sm:$0xf]
  %v42 = vld [vmem:[%s5 + $0x88] sm:$0xf]
  %v43 = vld [vmem:[%s5 + $0x90] sm:$0xf]
  %v44 = vld [vmem:[%s5 + $0x98] sm:$0xf]
  %v45 = vld [vmem:[%s1] sm:$0xf]
  %v46 = vld [vmem:[%s2] sm:$0xf]
  %49 = vst [vmem:[#allocation1] ss:$2 sm:$0xff] %v23
  %s50 = scalar_lea.vmem [#allocation1], 16
  %51 = vst [vmem:[%s50] ss:$2 sm:$0xff] %v24
  %v52 = vld.sshfl [vmem:[#allocation1] sm:$0xff pattern:$0x75316420]
  %v53 = vld.sshfl [vmem:[#allocation1 + $0x8] sm:$0xff pattern:$0x75316420]
  %v54 = vld.sshfl [vmem:[#allocation1 + $0x10] sm:$0xff pattern:$0x75316420]
  %v55 = vld.sshfl [vmem:[#allocation1 + $0x18] sm:$0xff pattern:$0x75316420]
  %60 = vrot.lane.b32.xlu0 %v52, 17
  %v61 = vpop.permute.xlu0 %60
  %62 = vrot.lane.b32.xlu0 %v53, 17
  %v63 = vpop.permute.xlu0 %62
  %64 = vrot.lane.b32.xlu0 %v54, 17
  %v65 = vpop.permute.xlu0 %64
  %66 = vrot.lane.b32.xlu0 %v55, 17
  %v67 = vpop.permute.xlu0 %66
  %v68 = vlaneseq
  %v69 = vand.u32 %v68, 127
  %vm70 = vcmp.lt.s32.totalorder %v69, 17
  %v71 = vsel %vm70, %v65, %v67
  %v72 = vsel %vm70, %v63, %v65
  %v73 = vsel %vm70, %v61, %v63
  %v74 = vsel %vm70, %v67, %v61
  %75 = vst [vmem:[#allocation1] ss:$2 sm:$0xff] %v23
  %s76 = scalar_lea.vmem [#allocation1], 16
  %77 = vst [vmem:[%s76] ss:$2 sm:$0xff] %v24
  %v78 = vld.sshfl [vmem:[#allocation1] sm:$0xff pattern:$0x75316420]
  %v79 = vld.sshfl [vmem:[#allocation1 + $0x8] sm:$0xff pattern:$0x75316420]
  %v80 = vld.sshfl [vmem:[#allocation1 + $0x10] sm:$0xff pattern:$0x75316420]
  %v81 = vld.sshfl [vmem:[#allocation1 + $0x18] sm:$0xff pattern:$0x75316420]
  %86 = vrot.lane.b32.xlu0 %v78, 16
  %v87 = vpop.permute.xlu0 %86
  %88 = vrot.lane.b32.xlu0 %v79, 16
  %v89 = vpop.permute.xlu0 %88
  %90 = vrot.lane.b32.xlu0 %v80, 16
  %v91 = vpop.permute.xlu0 %90
  %92 = vrot.lane.b32.xlu0 %v81, 16
  %v93 = vpop.permute.xlu0 %92
  %vm94 = vcmp.lt.s32.totalorder %v69, 16
  %v95 = vsel %vm94, %v91, %v93
  %v96 = vsel %vm94, %v89, %v91
  %v97 = vsel %vm94, %v87, %v89
  %v98 = vsel %vm94, %v93, %v87
  %99 = vst [vmem:[#allocation1] ss:$2 sm:$0xff] %v23
  %s100 = scalar_lea.vmem [#allocation1], 16
  %101 = vst [vmem:[%s100] ss:$2 sm:$0xff] %v24
  %v102 = vld.sshfl [vmem:[#allocation1] sm:$0xff pattern:$0x75316420]
  %v103 = vld.sshfl [vmem:[#allocation1 + $0x8] sm:$0xff pattern:$0x75316420]
  %v104 = vld.sshfl [vmem:[#allocation1 + $0x10] sm:$0xff pattern:$0x75316420]
  %v105 = vld.sshfl [vmem:[#allocation1 + $0x18] sm:$0xff pattern:$0x75316420]
  %110 = vrot.lane.b32.xlu0 %v102, 15
  %v111 = vpop.permute.xlu0 %110
  %112 = vrot.lane.b32.xlu0 %v103, 15
  %v113 = vpop.permute.xlu0 %112
  %114 = vrot.lane.b32.xlu0 %v104, 15
  %v115 = vpop.permute.xlu0 %114
  %116 = vrot.lane.b32.xlu0 %v105, 15
  %v117 = vpop.permute.xlu0 %116
  %vm118 = vcmp.lt.s32.totalorder %v69, 15
  %v119 = vsel %vm118, %v115, %v117
  %v120 = vsel %vm118, %v113, %v115
  %v121 = vsel %vm118, %v111, %v113
  %v122 = vsel %vm118, %v117, %v111
  %123 = vst [vmem:[#allocation1] ss:$2 sm:$0xff] %v23
  %s124 = scalar_lea.vmem [#allocation1], 16
  %125 = vst [vmem:[%s124] ss:$2 sm:$0xff] %v24
  %v126 = vld.sshfl [vmem:[#allocation1] sm:$0xff pattern:$0x75316420]
  %v127 = vld.sshfl [vmem:[#allocation1 + $0x8] sm:$0xff pattern:$0x75316420]
  %v128 = vld.sshfl [vmem:[#allocation1 + $0x10] sm:$0xff pattern:$0x75316420]
  %v129 = vld.sshfl [vmem:[#allocation1 + $0x18] sm:$0xff pattern:$0x75316420]
  %134 = vrot.lane.b32.xlu0 %v126, 1
  %v135 = vpop.permute.xlu0 %134
  %136 = vrot.lane.b32.xlu0 %v127, 1
  %v137 = vpop.permute.xlu0 %136
  %138 = vrot.lane.b32.xlu0 %v128, 1
  %v139 = vpop.permute.xlu0 %138
  %140 = vrot.lane.b32.xlu0 %v129, 1
  %v141 = vpop.permute.xlu0 %140
  %vm142 = vcmp.lt.s32.totalorder %v69, 1
  %v143 = vsel %vm142, %v139, %v141
  %v144 = vsel %vm142, %v137, %v139
  %v145 = vsel %vm142, %v135, %v137
  %v146 = vsel %vm142, %v141, %v135
  %147 = vst [vmem:[#allocation1] ss:$2 sm:$0xff] %v23
  %s148 = scalar_lea.vmem [#allocation1], 16
  %149 = vst [vmem:[%s148] ss:$2 sm:$0xff] %v24
  %v150 = vld.sshfl [vmem:[#allocation1] sm:$0xff pattern:$0x75316420]
  %v151 = vld.sshfl [vmem:[#allocation1 + $0x8] sm:$0xff pattern:$0x75316420]
  %v152 = vld.sshfl [vmem:[#allocation1 + $0x10] sm:$0xff pattern:$0x75316420]
  %v153 = vld.sshfl [vmem:[#allocation1 + $0x18] sm:$0xff pattern:$0x75316420]
  %158 = vrot.lane.b32.xlu0 %v150, 127
  %v159 = vpop.permute.xlu0 %158
  %160 = vrot.lane.b32.xlu0 %v151, 127
  %v161 = vpop.permute.xlu0 %160
  %162 = vrot.lane.b32.xlu0 %v152, 127
  %v163 = vpop.permute.xlu0 %162
  %164 = vrot.lane.b32.xlu0 %v153, 127
  %v165 = vpop.permute.xlu0 %164
  %vm166 = vcmp.lt.s32.totalorder %v69, 127
  %v167 = vsel %vm166, %v163, %v165
  %v168 = vsel %vm166, %v161, %v163
  %v169 = vsel %vm166, %v159, %v161
  %v170 = vsel %vm166, %v165, %v159
  %171 = vst [vmem:[#allocation1] ss:$2 sm:$0xff] %v23
  %s172 = scalar_lea.vmem [#allocation1], 16
  %173 = vst [vmem:[%s172] ss:$2 sm:$0xff] %v24
  %v174 = vld.sshfl [vmem:[#allocation1] sm:$0xff pattern:$0x75316420]
  %v175 = vld.sshfl [vmem:[#allocation1 + $0x8] sm:$0xff pattern:$0x75316420]
  %v176 = vld.sshfl [vmem:[#allocation1 + $0x10] sm:$0xff pattern:$0x75316420]
  %v177 = vld.sshfl [vmem:[#allocation1 + $0x18] sm:$0xff pattern:$0x75316420]
  %182 = vrot.lane.b32.xlu0 %v174, 113
  %v183 = vpop.permute.xlu0 %182
  %184 = vrot.lane.b32.xlu0 %v175, 113
  %v185 = vpop.permute.xlu0 %184
  %186 = vrot.lane.b32.xlu0 %v176, 113
  %v187 = vpop.permute.xlu0 %186
  %188 = vrot.lane.b32.xlu0 %v177, 113
  %v189 = vpop.permute.xlu0 %188
  %vm190 = vcmp.lt.s32.totalorder %v69, 113
  %v191 = vsel %vm190, %v187, %v189
  %v192 = vsel %vm190, %v185, %v187
  %v193 = vsel %vm190, %v183, %v185
  %v194 = vsel %vm190, %v189, %v183
  %195 = vst [vmem:[#allocation1] ss:$2 sm:$0xff] %v23
  %s196 = scalar_lea.vmem [#allocation1], 16
  %197 = vst [vmem:[%s196] ss:$2 sm:$0xff] %v24
  %v198 = vld.sshfl [vmem:[#allocation1] sm:$0xff pattern:$0x75316420]
  %v199 = vld.sshfl [vmem:[#allocation1 + $0x8] sm:$0xff pattern:$0x75316420]
  %v200 = vld.sshfl [vmem:[#allocation1 + $0x10] sm:$0xff pattern:$0x75316420]
  %v201 = vld.sshfl [vmem:[#allocation1 + $0x18] sm:$0xff pattern:$0x75316420]
  %206 = vrot.lane.b32.xlu0 %v198, 112
  %v207 = vpop.permute.xlu0 %206
  %208 = vrot.lane.b32.xlu0 %v199, 112
  %v209 = vpop.permute.xlu0 %208
  %210 = vrot.lane.b32.xlu0 %v200, 112
  %v211 = vpop.permute.xlu0 %210
  %212 = vrot.lane.b32.xlu0 %v201, 112
  %v213 = vpop.permute.xlu0 %212
  %vm214 = vcmp.lt.s32.totalorder %v69, 112
  %v215 = vsel %vm214, %v211, %v213
  %v216 = vsel %vm214, %v209, %v211
  %v217 = vsel %vm214, %v207, %v209
  %v218 = vsel %vm214, %v213, %v207
  %219 = vst [vmem:[#allocation1] ss:$2 sm:$0xff] %v23
  %s220 = scalar_lea.vmem [#allocation1], 16
  %221 = vst [vmem:[%s220] ss:$2 sm:$0xff] %v24
  %v222 = vld.sshfl [vmem:[#allocation1] sm:$0xff pattern:$0x75316420]
  %v223 = vld.sshfl [vmem:[#allocation1 + $0x8] sm:$0xff pattern:$0x75316420]
  %v224 = vld.sshfl [vmem:[#allocation1 + $0x10] sm:$0xff pattern:$0x75316420]
  %v225 = vld.sshfl [vmem:[#allocation1 + $0x18] sm:$0xff pattern:$0x75316420]
  %230 = vrot.lane.b32.xlu0 %v222, 111
  %v231 = vpop.permute.xlu0 %230
  %232 = vrot.lane.b32.xlu0 %v223, 111
  %v233 = vpop.permute.xlu0 %232
  %234 = vrot.lane.b32.xlu0 %v224, 111
  %v235 = vpop.permute.xlu0 %234
  %236 = vrot.lane.b32.xlu0 %v225, 111
  %v237 = vpop.permute.xlu0 %236
  %vm238 = vcmp.lt.s32.totalorder %v69, 111
  %v239 = vsel %vm238, %v235, %v237
  %v240 = vsel %vm238, %v233, %v235
  %v241 = vsel %vm238, %v231, %v233
  %v242 = vsel %vm238, %v237, %v231
  %v247 = vrot.slane %v98, 4
  %v248 = vrot.slane %v97, 4
  %v249 = vrot.slane %v96, 4
  %v250 = vrot.slane %v95, 4
  %v259 = vrot.slane %v146, 4
  %v260 = vrot.slane %v145, 4
  %v261 = vrot.slane %v144, 4
  %v262 = vrot.slane %v143, 4
  %267 = vst [vmem:[#allocation1] ss:$2 sm:$0xff] %v23
  %s268 = scalar_lea.vmem [#allocation1], 16
  %269 = vst [vmem:[%s268] ss:$2 sm:$0xff] %v24
  %v270 = vld.sshfl [vmem:[#allocation1] sm:$0xff pattern:$0x75316420]
  %v271 = vld.sshfl [vmem:[#allocation1 + $0x8] sm:$0xff pattern:$0x75316420]
  %v272 = vld.sshfl [vmem:[#allocation1 + $0x10] sm:$0xff pattern:$0x75316420]
  %v273 = vld.sshfl [vmem:[#allocation1 + $0x18] sm:$0xff pattern:$0x75316420]
  %v282 = vrot.slane %v169, 4
  %v283 = vrot.slane %v168, 4
  %v284 = vrot.slane %v167, 4
  %v285 = vrot.slane %v170, 4
  %v294 = vrot.slane %v217, 4
  %v295 = vrot.slane %v216, 4
  %v296 = vrot.slane %v215, 4
  %v297 = vrot.slane %v218, 4
  %vm302 = vcmask 1043456
  %v303 = vsel %vm302, %v74, %v247
  %v304 = vsel %vm302, %v73, %v248
  %v305 = vsel %vm302, %v72, %v249
  %v306 = vsel %vm302, %v71, %v250
  %v307 = vsel %vm302, %v122, %v259
  %v308 = vsel %vm302, %v121, %v260
  %v309 = vsel %vm302, %v120, %v261
  %v310 = vsel %vm302, %v119, %v262
  %v311 = vsel %vm302, %v270, %v282
  %v312 = vsel %vm302, %v271, %v283
  %v313 = vsel %vm302, %v272, %v284
  %v314 = vsel %vm302, %v273, %v285
  %v315 = vsel %vm302, %v193, %v294
  %v316 = vsel %vm302, %v192, %v295
  %v317 = vsel %vm302, %v191, %v296
  %v318 = vsel %vm302, %v194, %v297
  %v319 = vmul.f32 %v303, %v25
  %v320 = vmul.f32 %v304, %v26
  %v321 = vmul.f32 %v305, %v27
  %v322 = vmul.f32 %v306, %v28
  %v323 = vmul.f32 %v307, %v29
  %v324 = vmul.f32 %v308, %v30
  %v325 = vmul.f32 %v309, %v31
  %v326 = vmul.f32 %v310, %v32
  %v327 = vmul.f32 %v311, %v33
  %v328 = vmul.f32 %v312, %v34
  %v329 = vmul.f32 %v313, %v35
  %v330 = vmul.f32 %v314, %v36
  %v331 = vmul.f32 %v315, %v37
  %v332 = vmul.f32 %v316, %v38
  %v333 = vmul.f32 %v317, %v39
  %v334 = vmul.f32 %v318, %v40
  %v335 = vmul.f32 %v241, %v41
  %v336 = vmul.f32 %v240, %v42
  %v337 = vmul.f32 %v239, %v43
  %v338 = vmul.f32 %v242, %v44
  %340 = vset.pattern.permute.xlu0 0
  %341 = vperm.xlu0 %340, %v46
  %v342 = vpop.permute.xlu0 %341
  %vm344 = vcmask 293888
  %v346 = vsel %vm344, %v45, 0
  %v349 = vsel %vm302, %v335, 0
  %v352 = vsel %vm302, %v336, 0
  %v355 = vsel %vm302, %v337, 0
  %v358 = vsel %vm302, %v338, 0
  %360 = vmatpush.msra.mxu0 0.0
  %361 = vmatpush.msra.mxu0 0.0
  %362 = vmatpush.msra.mxu0 0.0
  %363 = vmatpush.msra.mxu0 0.0
  %364 = vmatpush.msra.mxu0 0.0
  %365 = vmatpush.msra.mxu0 0.0
  %366 = vmatpush.msra.mxu0 0.0
  %367 = vmatpush.msra.mxu0 0.0
  %368 = vmatpush.msra.mxu0 0.0
  %369 = vmatpush.msra.mxu0 0.0
  %370 = vmatpush.msra.mxu0 0.0
  %371 = vmatpush.msra.mxu0 %v349
  %372 = vmatpush.msra.mxu0 %v331
  %373 = vmatpush.msra.mxu0 %v327
  %374 = vmatpush.msra.mxu0 %v323
  %375 = vmatpush.msra.mxu0 %v319
  %376 = vmatmul.f32.gmra.mxu0 %v346
  %v377 = vpop.f32.mrf.mxu0
  %v378 = vadd.f32 %v342, %v377
  %379 = vdwg.mxu0
  %380 = vmatpush.msra.mxu0 0.0
  %381 = vmatpush.msra.mxu0 0.0
  %382 = vmatpush.msra.mxu0 0.0
  %383 = vmatpush.msra.mxu0 0.0
  %384 = vmatpush.msra.mxu0 0.0
  %385 = vmatpush.msra.mxu0 0.0
  %386 = vmatpush.msra.mxu0 0.0
  %387 = vmatpush.msra.mxu0 0.0
  %388 = vmatpush.msra.mxu0 0.0
  %389 = vmatpush.msra.mxu0 0.0
  %390 = vmatpush.msra.mxu0 0.0
  %391 = vmatpush.msra.mxu0 %v352
  %392 = vmatpush.msra.mxu0 %v332
  %393 = vmatpush.msra.mxu0 %v328
  %394 = vmatpush.msra.mxu0 %v324
  %395 = vmatpush.msra.mxu0 %v320
  %396 = vmatmul.f32.gmra.mxu0 %v346
  %v397 = vpop.f32.mrf.mxu0
  %v398 = vadd.f32 %v342, %v397
  %399 = vdwg.mxu0
  %400 = vmatpush.msra.mxu0 0.0
  %401 = vmatpush.msra.mxu0 0.0
  %402 = vmatpush.msra.mxu0 0.0
  %403 = vmatpush.msra.mxu0 0.0
  %404 = vmatpush.msra.mxu0 0.0
  %405 = vmatpush.msra.mxu0 0.0
  %406 = vmatpush.msra.mxu0 0.0
  %407 = vmatpush.msra.mxu0 0.0
  %408 = vmatpush.msra.mxu0 0.0
  %409 = vmatpush.msra.mxu0 0.0
  %410 = vmatpush.msra.mxu0 0.0
  %411 = vmatpush.msra.mxu0 %v355
  %412 = vmatpush.msra.mxu0 %v333
  %413 = vmatpush.msra.mxu0 %v329
  %414 = vmatpush.msra.mxu0 %v325
  %415 = vmatpush.msra.mxu0 %v321
  %416 = vmatmul.f32.gmra.mxu0 %v346
  %v417 = vpop.f32.mrf.mxu0
  %v418 = vadd.f32 %v342, %v417
  %419 = vdwg.mxu0
  %420 = vmatpush.msra.mxu0 0.0
  %421 = vmatpush.msra.mxu0 0.0
  %422 = vmatpush.msra.mxu0 0.0
  %423 = vmatpush.msra.mxu0 0.0
  %424 = vmatpush.msra.mxu0 0.0
  %425 = vmatpush.msra.mxu0 0.0
  %426 = vmatpush.msra.mxu0 0.0
  %427 = vmatpush.msra.mxu0 0.0
  %428 = vmatpush.msra.mxu0 0.0
  %429 = vmatpush.msra.mxu0 0.0
  %430 = vmatpush.msra.mxu0 0.0
  %431 = vmatpush.msra.mxu0 %v358
  %432 = vmatpush.msra.mxu0 %v334
  %433 = vmatpush.msra.mxu0 %v330
  %434 = vmatpush.msra.mxu0 %v326
  %435 = vmatpush.msra.mxu0 %v322
  %436 = vmatmul.f32.gmra.mxu0 %v346
  %v437 = vpop.f32.mrf.mxu0
  %v438 = vadd.f32 %v342, %v437
  %439 = vdwg.mxu0
  %vm440 = vcmp.ge.f32.partialorder %v378, 0.0
  %vm441 = vcmp.ge.f32.partialorder %v398, 0.0
  %vm442 = vcmp.ge.f32.partialorder %v418, 0.0
  %vm443 = vcmp.ge.f32.partialorder %v438, 0.0
  %v444 = vmul.f32 %v378, 0.01
  %v445 = vmul.f32 %v398, 0.01
  %v446 = vmul.f32 %v418, 0.01
  %v447 = vmul.f32 %v438, 0.01
  %v448 = vsel %vm440, %v378, %v444
  %v449 = vsel %vm441, %v398, %v445
  %v450 = vsel %vm442, %v418, %v446
  %v451 = vsel %vm443, %v438, %v447
  %v452 = vld [vmem:[%s3] sm:$0xf]
  %v453 = vld [vmem:[%s4] sm:$0xf]
  %454 = vrot.lane.b32.xlu0 %v448, 17
  %v455 = vpop.permute.xlu0 %454
  %456 = vrot.lane.b32.xlu0 %v449, 17
  %v457 = vpop.permute.xlu0 %456
  %458 = vrot.lane.b32.xlu0 %v450, 17
  %v459 = vpop.permute.xlu0 %458
  %460 = vrot.lane.b32.xlu0 %v451, 17
  %v461 = vpop.permute.xlu0 %460
  %v462 = vsel %vm70, %v459, %v461
  %v463 = vsel %vm70, %v457, %v459
  %v464 = vsel %vm70, %v455, %v457
  %v465 = vsel %vm70, %v461, %v455
  %466 = vrot.lane.b32.xlu0 %v448, 16
  %v467 = vpop.permute.xlu0 %466
  %468 = vrot.lane.b32.xlu0 %v449, 16
  %v469 = vpop.permute.xlu0 %468
  %470 = vrot.lane.b32.xlu0 %v450, 16
  %v471 = vpop.permute.xlu0 %470
  %472 = vrot.lane.b32.xlu0 %v451, 16
  %v473 = vpop.permute.xlu0 %472
  %v474 = vsel %vm94, %v471, %v473
  %v475 = vsel %vm94, %v469, %v471
  %v476 = vsel %vm94, %v467, %v469
  %v477 = vsel %vm94, %v473, %v467
  %478 = vrot.lane.b32.xlu0 %v448, 15
  %v479 = vpop.permute.xlu0 %478
  %480 = vrot.lane.b32.xlu0 %v449, 15
  %v481 = vpop.permute.xlu0 %480
  %482 = vrot.lane.b32.xlu0 %v450, 15
  %v483 = vpop.permute.xlu0 %482
  %484 = vrot.lane.b32.xlu0 %v451, 15
  %v485 = vpop.permute.xlu0 %484
  %v486 = vsel %vm118, %v483, %v485
  %v487 = vsel %vm118, %v481, %v483
  %v488 = vsel %vm118, %v479, %v481
  %v489 = vsel %vm118, %v485, %v479
  %490 = vrot.lane.b32.xlu0 %v448, 1
  %v491 = vpop.permute.xlu0 %490
  %492 = vrot.lane.b32.xlu0 %v449, 1
  %v493 = vpop.permute.xlu0 %492
  %494 = vrot.lane.b32.xlu0 %v450, 1
  %v495 = vpop.permute.xlu0 %494
  %496 = vrot.lane.b32.xlu0 %v451, 1
  %v497 = vpop.permute.xlu0 %496
  %v498 = vsel %vm142, %v495, %v497
  %v499 = vsel %vm142, %v493, %v495
  %v500 = vsel %vm142, %v491, %v493
  %v501 = vsel %vm142, %v497, %v491
  %502 = vrot.lane.b32.xlu0 %v448, 127
  %v503 = vpop.permute.xlu0 %502
  %504 = vrot.lane.b32.xlu0 %v449, 127
  %v505 = vpop.permute.xlu0 %504
  %506 = vrot.lane.b32.xlu0 %v450, 127
  %v507 = vpop.permute.xlu0 %506
  %508 = vrot.lane.b32.xlu0 %v451, 127
  %v509 = vpop.permute.xlu0 %508
  %v510 = vsel %vm166, %v507, %v509
  %v511 = vsel %vm166, %v505, %v507
  %v512 = vsel %vm166, %v503, %v505
  %v513 = vsel %vm166, %v509, %v503
  %514 = vrot.lane.b32.xlu0 %v448, 113
  %v515 = vpop.permute.xlu0 %514
  %516 = vrot.lane.b32.xlu0 %v449, 113
  %v517 = vpop.permute.xlu0 %516
  %518 = vrot.lane.b32.xlu0 %v450, 113
  %v519 = vpop.permute.xlu0 %518
  %520 = vrot.lane.b32.xlu0 %v451, 113
  %v521 = vpop.permute.xlu0 %520
  %v522 = vsel %vm190, %v519, %v521
  %v523 = vsel %vm190, %v517, %v519
  %v524 = vsel %vm190, %v515, %v517
  %v525 = vsel %vm190, %v521, %v515
  %526 = vrot.lane.b32.xlu0 %v448, 112
  %v527 = vpop.permute.xlu0 %526
  %528 = vrot.lane.b32.xlu0 %v449, 112
  %v529 = vpop.permute.xlu0 %528
  %530 = vrot.lane.b32.xlu0 %v450, 112
  %v531 = vpop.permute.xlu0 %530
  %532 = vrot.lane.b32.xlu0 %v451, 112
  %v533 = vpop.permute.xlu0 %532
  %v534 = vsel %vm214, %v531, %v533
  %v535 = vsel %vm214, %v529, %v531
  %v536 = vsel %vm214, %v527, %v529
  %v537 = vsel %vm214, %v533, %v527
  %538 = vrot.lane.b32.xlu0 %v448, 111
  %v539 = vpop.permute.xlu0 %538
  %540 = vrot.lane.b32.xlu0 %v449, 111
  %v541 = vpop.permute.xlu0 %540
  %542 = vrot.lane.b32.xlu0 %v450, 111
  %v543 = vpop.permute.xlu0 %542
  %544 = vrot.lane.b32.xlu0 %v451, 111
  %v545 = vpop.permute.xlu0 %544
  %v546 = vsel %vm238, %v543, %v545
  %v547 = vsel %vm238, %v541, %v543
  %v548 = vsel %vm238, %v539, %v541
  %v549 = vsel %vm238, %v545, %v539
  %v554 = vrot.slane %v477, 4
  %v555 = vrot.slane %v476, 4
  %v556 = vrot.slane %v475, 4
  %v557 = vrot.slane %v474, 4
  %v566 = vrot.slane %v501, 4
  %v567 = vrot.slane %v500, 4
  %v568 = vrot.slane %v499, 4
  %v569 = vrot.slane %v498, 4
  %v578 = vrot.slane %v512, 4
  %v579 = vrot.slane %v511, 4
  %v580 = vrot.slane %v510, 4
  %v581 = vrot.slane %v513, 4
  %v590 = vrot.slane %v536, 4
  %v591 = vrot.slane %v535, 4
  %v592 = vrot.slane %v534, 4
  %v593 = vrot.slane %v537, 4
  %v598 = vsel %vm302, %v465, %v554
  %v599 = vsel %vm302, %v464, %v555
  %v600 = vsel %vm302, %v463, %v556
  %v601 = vsel %vm302, %v462, %v557
  %v602 = vsel %vm302, %v489, %v566
  %v603 = vsel %vm302, %v488, %v567
  %v604 = vsel %vm302, %v487, %v568
  %v605 = vsel %vm302, %v486, %v569
  %v606 = vsel %vm302, %v448, %v578
  %v607 = vsel %vm302, %v449, %v579
  %v608 = vsel %vm302, %v450, %v580
  %v609 = vsel %vm302, %v451, %v581
  %v610 = vsel %vm302, %v524, %v590
  %v611 = vsel %vm302, %v523, %v591
  %v612 = vsel %vm302, %v522, %v592
  %v613 = vsel %vm302, %v525, %v593
  %v614 = vmul.f32 %v598, %v25
  %v615 = vmul.f32 %v599, %v26
  %v616 = vmul.f32 %v600, %v27
  %v617 = vmul.f32 %v601, %v28
  %v618 = vmul.f32 %v602, %v29
  %v619 = vmul.f32 %v603, %v30
  %v620 = vmul.f32 %v604, %v31
  %v621 = vmul.f32 %v605, %v32
  %v622 = vmul.f32 %v606, %v33
  %v623 = vmul.f32 %v607, %v34
  %v624 = vmul.f32 %v608, %v35
  %v625 = vmul.f32 %v609, %v36
  %v626 = vmul.f32 %v610, %v37
  %v627 = vmul.f32 %v611, %v38
  %v628 = vmul.f32 %v612, %v39
  %v629 = vmul.f32 %v613, %v40
  %v630 = vmul.f32 %v548, %v41
  %v631 = vmul.f32 %v547, %v42
  %v632 = vmul.f32 %v546, %v43
  %v633 = vmul.f32 %v549, %v44
  %635 = vset.pattern.permute.xlu0 0
  %636 = vperm.xlu0 %635, %v453
  %v637 = vpop.permute.xlu0 %636
  %v640 = vsel %vm344, %v452, 0
  %v643 = vsel %vm302, %v630, 0
  %v646 = vsel %vm302, %v631, 0
  %v649 = vsel %vm302, %v632, 0
  %v652 = vsel %vm302, %v633, 0
  %654 = vmatpush.msra.mxu0 0.0
  %655 = vmatpush.msra.mxu0 0.0
  %656 = vmatpush.msra.mxu0 0.0
  %657 = vmatpush.msra.mxu0 0.0
  %658 = vmatpush.msra.mxu0 0.0
  %659 = vmatpush.msra.mxu0 0.0
  %660 = vmatpush.msra.mxu0 0.0
  %661 = vmatpush.msra.mxu0 0.0
  %662 = vmatpush.msra.mxu0 0.0
  %663 = vmatpush.msra.mxu0 0.0
  %664 = vmatpush.msra.mxu0 0.0
  %665 = vmatpush.msra.mxu0 %v643
  %666 = vmatpush.msra.mxu0 %v626
  %667 = vmatpush.msra.mxu0 %v622
  %668 = vmatpush.msra.mxu0 %v618
  %669 = vmatpush.msra.mxu0 %v614
  %670 = vmatmul.f32.gmra.mxu0 %v640
  %v671 = vpop.f32.mrf.mxu0
  %v672 = vadd.f32 %v637, %v671
  %673 = vdwg.mxu0
  %674 = vmatpush.msra.mxu0 0.0
  %675 = vmatpush.msra.mxu0 0.0
  %676 = vmatpush.msra.mxu0 0.0
  %677 = vmatpush.msra.mxu0 0.0
  %678 = vmatpush.msra.mxu0 0.0
  %679 = vmatpush.msra.mxu0 0.0
  %680 = vmatpush.msra.mxu0 0.0
  %681 = vmatpush.msra.mxu0 0.0
  %682 = vmatpush.msra.mxu0 0.0
  %683 = vmatpush.msra.mxu0 0.0
  %684 = vmatpush.msra.mxu0 0.0
  %685 = vmatpush.msra.mxu0 %v646
  %686 = vmatpush.msra.mxu0 %v627
  %687 = vmatpush.msra.mxu0 %v623
  %688 = vmatpush.msra.mxu0 %v619
  %689 = vmatpush.msra.mxu0 %v615
  %690 = vmatmul.f32.gmra.mxu0 %v640
  %v691 = vpop.f32.mrf.mxu0
  %v692 = vadd.f32 %v637, %v691
  %693 = vdwg.mxu0
  %694 = vmatpush.msra.mxu0 0.0
  %695 = vmatpush.msra.mxu0 0.0
  %696 = vmatpush.msra.mxu0 0.0
  %697 = vmatpush.msra.mxu0 0.0
  %698 = vmatpush.msra.mxu0 0.0
  %699 = vmatpush.msra.mxu0 0.0
  %700 = vmatpush.msra.mxu0 0.0
  %701 = vmatpush.msra.mxu0 0.0
  %702 = vmatpush.msra.mxu0 0.0
  %703 = vmatpush.msra.mxu0 0.0
  %704 = vmatpush.msra.mxu0 0.0
  %705 = vmatpush.msra.mxu0 %v649
  %706 = vmatpush.msra.mxu0 %v628
  %707 = vmatpush.msra.mxu0 %v624
  %708 = vmatpush.msra.mxu0 %v620
  %709 = vmatpush.msra.mxu0 %v616
  %710 = vmatmul.f32.gmra.mxu0 %v640
  %v711 = vpop.f32.mrf.mxu0
  %v712 = vadd.f32 %v637, %v711
  %713 = vdwg.mxu0
  %714 = vmatpush.msra.mxu0 0.0
  %715 = vmatpush.msra.mxu0 0.0
  %716 = vmatpush.msra.mxu0 0.0
  %717 = vmatpush.msra.mxu0 0.0
  %718 = vmatpush.msra.mxu0 0.0
  %719 = vmatpush.msra.mxu0 0.0
  %720 = vmatpush.msra.mxu0 0.0
  %721 = vmatpush.msra.mxu0 0.0
  %722 = vmatpush.msra.mxu0 0.0
  %723 = vmatpush.msra.mxu0 0.0
  %724 = vmatpush.msra.mxu0 0.0
  %725 = vmatpush.msra.mxu0 %v652
  %726 = vmatpush.msra.mxu0 %v629
  %727 = vmatpush.msra.mxu0 %v625
  %728 = vmatpush.msra.mxu0 %v621
  %729 = vmatpush.msra.mxu0 %v617
  %730 = vmatmul.f32.gmra.mxu0 %v640
  %v731 = vpop.f32.mrf.mxu0
  %v732 = vadd.f32 %v637, %v731
  %733 = vdwg.mxu0
  %v738 = vrot.slane %v692, 4
  %v739 = vrot.slane %v732, 4
  %v740 = vsel %vm302, %v672, %v738
  %v741 = vsel %vm302, %v712, %v739
  %v744 = vadd.f32 %v23, %v740
  %v745 = vadd.f32 %v24, %v741
  %746 = vst [vmem:[%s6] sm:$0xff] %v744
  %747 = vst [vmem:[%s6 + $0x8] sm:$0xff] %v745
  // Predicated region
  $region26: #{residual_block_forward.1} parent=0 // pred_check
    _
  $region27: #{residual_block_forward.1} parent=0 // pred_check_branch
    %749 = sbr.rel (0) target = $region29
  $region28: #{residual_block_forward.1} parent=0 // pred_region
    _
  $region29: #{residual_block_forward.1} parent=0 // pred_fallthru
    _
  // Predicated region
  $region30: #{residual_block_forward.1} parent=0 // pred_check
    _
  $region31: #{residual_block_forward.1} parent=0 // pred_check_branch
    %751 = sbr.rel (0) target = $region33
  $region32: #{residual_block_forward.1} parent=0 // pred_region
    _
  $region33: #{residual_block_forward.1} parent=0 // pred_fallthru
    _

</llo_original>
